<compile_context>
chip_gen: v7x
topology: tpu7x:2x2x1
jax: 0.10.0
libtpu: 0.0.40
codegen_flags: <defaults>
</compile_context>

<pallas_src>
import jax
import jax.numpy as jnp
from jax.experimental import pallas as pl
from jax.experimental.pallas import tpu as pltpu


def _conservative_softmax_kernel(x_ref, o_ref):
    # Elementwise x + sqrt(1 + x^2), per-row reduction over classes, then a
    # row-wise reciprocal (only (TB,1) values) and broadcast multiply.
    x = x_ref[...].astype(jnp.float32)
    nu = x + jnp.sqrt(1.0 + x * x)
    denom = jnp.sum(nu, axis=-1, keepdims=True)        # (TB, 1)
    # Exact reciprocal keeps 1e-5 tolerance vs. the reference; switch to
    # approx=True (EUP vrcp) if looser tolerance is acceptable.
    inv = pl.reciprocal(denom, approx=False)
    o_ref[...] = (nu * inv).astype(o_ref.dtype)


def conservative_softmax_monotone(x, num_classes=None, a=None, block_rows=1024):
    """Conservative monotone softmax.

    x: (B, num_classes) array.
    `a` is accepted for parity with the PyTorch module but is unused by the
    reference forward pass (the module only stores it).
    `block_rows`: max rows per grid block (rounded down to a multiple of 8).
    """
    B, C = x.shape
    if num_classes is not None:
        assert C == num_classes

    if B <= block_rows:
        # Single block covering the full array extent — exempt from the
        # (8, 128) divisibility rule.
        tb = B
    else:
        # Multiple-of-8 (sublane) row tile; Pallas handles the partial tail
        # block (the per-row reduction stays entirely inside a block).
        tb = max(8, (min(block_rows, B) // 8) * 8)

    grid = (pl.cdiv(B, tb),)

    return pl.pallas_call(
        _conservative_softmax_kernel,
        out_shape=jax.ShapeDtypeStruct((B, C), x.dtype),
        grid_spec=pltpu.PrefetchScalarGridSpec(
            num_scalar_prefetch=0,
            grid=grid,
            in_specs=[pl.BlockSpec((tb, C), lambda i: (i, 0))],
            out_specs=pl.BlockSpec((tb, C), lambda i: (i, 0)),
        ),
        compiler_params=pltpu.CompilerParams(
            # Rows are independent -> parallel grid axis (dual-TC sharding on v7x).
            dimension_semantics=("parallel",),
        ),
    )(x)


def _reference(x):
    # Pure-JAX reference mirroring the PyTorch loop exactly.
    nu = x + jnp.sqrt(1.0 + x ** 2)
    return nu / jnp.sum(nu, axis=1, keepdims=True)


if __name__ == "__main__":
    num_classes = 10
    a = 0.01  # module hyperparameter; stored but unused in forward (matches reference)

    key = jax.random.PRNGKey(0)

    # Case 1: small batch, single full-extent block.
    batch = 8
    x = jax.random.normal(key, (batch, num_classes), dtype=jnp.float32)
    out = conservative_softmax_monotone(x, num_classes=num_classes, a=a)
    out = jax.block_until_ready(out)
    ref = _reference(x)
    assert out.shape == (batch, num_classes)
    assert jnp.allclose(out, ref, atol=1e-5, rtol=1e-5), "mismatch vs reference (small)"

    # Case 2: exercise the tiled path (multiple grid blocks + partial tail).
    batch2 = 20
    x2 = jax.random.normal(jax.random.PRNGKey(1), (batch2, num_classes), dtype=jnp.float32)
    out2 = conservative_softmax_monotone(x2, num_classes=num_classes, a=a, block_rows=8)
    out2 = jax.block_until_ready(out2)
    ref2 = _reference(x2)
    assert out2.shape == (batch2, num_classes)
    assert jnp.allclose(out2, ref2, atol=1e-5, rtol=1e-5), "mismatch vs reference (tiled)"

    print("KERNEL_OK")
</pallas_src>

<mosaic_0001>
module attributes {stable_mosaic.version = 11 : i64} {
  func.func @_conservative_softmax_kernel(%arg0: i32, %arg1: memref<8x10xf32, #tpu.memory_space<vmem>>, %arg2: memref<8x10xf32, #tpu.memory_space<vmem>>) attributes {dimension_semantics = [#tpu.dimension_semantics<parallel>], iteration_bounds = array<i64: 1>, scalar_prefetch = 0 : i64, scratch_operands = 0 : i64, tpu.core_type = #tpu.core_type<tc>, window_params = [{transform_indices = @transform_0, window_bounds = array<i64: 8, 10>}, {transform_indices = @transform_1, window_bounds = array<i64: 8, 10>}]} {
    %c0 = arith.constant 0 : index
    %c0_0 = arith.constant 0 : index
    %0 = vector.load %arg1[%c0, %c0_0] : memref<8x10xf32, #tpu.memory_space<vmem>>, vector<8x10xf32>
    %1 = arith.mulf %0, %0 : vector<8x10xf32>
    %cst = arith.constant 1.000000e+00 : f32
    %2 = vector.broadcast %cst : f32 to vector<8x10xf32>
    %3 = arith.addf %2, %1 : vector<8x10xf32>
    %4 = math.sqrt %3 : vector<8x10xf32>
    %5 = arith.addf %0, %4 : vector<8x10xf32>
    %cst_1 = arith.constant dense<0.000000e+00> : vector<8xf32>
    %6 = vector.multi_reduction <add>, %5, %cst_1 [1] : vector<8x10xf32> to vector<8xf32>
    %7 = vector.shape_cast %6 : vector<8xf32> to vector<8x1xf32>
    %8 = tpu.reciprocal %7 : vector<8x1xf32> -> vector<8x1xf32>
    %9 = vector.broadcast %8 : vector<8x1xf32> to vector<8x10xf32>
    %10 = arith.mulf %5, %9 : vector<8x10xf32>
    %c0_2 = arith.constant 0 : index
    %c0_3 = arith.constant 0 : index
    %11 = vector.load %arg2[%c0_2, %c0_3] : memref<8x10xf32, #tpu.memory_space<vmem>>, vector<8x10xf32>
    tpu.vector_store %arg2[%c0_2, %c0_3], %10 {strides = array<i32>} : memref<8x10xf32, #tpu.memory_space<vmem>>, vector<8x10xf32>,
    return
  }
  func.func @transform_0(%arg0: i32) -> (i32, i32) {
    %c0_i32 = arith.constant 0 : i32
    %c0_i32_0 = arith.constant 0 : i32
    return %arg0, %c0_i32 : i32, i32
  }
  func.func @transform_1(%arg0: i32) -> (i32, i32) {
    %c0_i32 = arith.constant 0 : i32
    %c0_i32_0 = arith.constant 0 : i32
    return %arg0, %c0_i32 : i32, i32
  }
}

</mosaic_0001>

<llo_original>
// kernel: tpu_custom_call.1
$region0: #{tpu_custom_call.1}
  #allocation0 [shape = 'u32[]', space=smem, size = 0x4, offset = 0x4, fixed_abs, tag = 'smem constant byte address 0x4 - core index']
  #allocation1 [shape = 'u32[144,128]{1,0:T(1,128)}', space=vmem, size = 0x12000, scoped, tag = 'internal scratch']
  %s0 = inlined_call_operand.hbm [shape: f32[8,10], index: 0, kind: input, shape index: {}]
  %s1 = inlined_call_operand.hbm [shape: f32[8,10], index: 1, kind: output, shape index: {}]
  %s2 = sld [smem:[#allocation0]]
  $region18: #{tpu_custom_call.1} parent=0
    _
  %s4 = ssub.s32 1, %s2
  %s5 = scalar_select 0, %s4, %s2
  $region1: #{tpu_custom_call.1} parent=0
    #allocation2 [shape = 'u8[4096]{0}', space=vmem, size = 0x1000, scoped, tag = 'input window, operand 0, single buffered']
    #allocation3 [shape = 's32[1]{0}', space=sflag, size = 0x4, scoped, tag = 'scoped memory for tpu_custom_call.1']
    #allocation4 [shape = 's32[1]{0}', space=sflag, size = 0x4, scoped, tag = 'scoped memory for tpu_custom_call.1']
    #allocation5 [shape = 'u8[4096]{0}', space=vmem, size = 0x1000, scoped, tag = 'output window, operand 0, single buffered']
    %6 = vsyncpa [#allocation3], 0
    %7 = vsyncpa [#allocation4], 0
    // Predicated region
    $region2: #{tpu_custom_call.1} parent=1 // pred_check
      _
    $region3: #{tpu_custom_call.1} parent=1 // pred_check_branch
      %9 = sbr.rel (0) target = $region5
    $region4: #{tpu_custom_call.1} parent=1 // pred_region
      %s11 = ssub.s32 128, 128
      %12 = vsyncadd [#allocation3], %s11
      %s14 = sshll.u32 [#allocation2], 4
      %s15 = int_to_ptr.vmem [resolvable:$true] %s14
      %17 = dma.hbm_to_vmem [thread:$0]  %s0, 128, %s15, [#allocation3]
    $region5: #{tpu_custom_call.1} parent=1 // pred_fallthru
      _
    // Predicated region
    $region6: #{tpu_custom_call.1} parent=1 // pred_check
      _
    $region7: #{tpu_custom_call.1} parent=1 // pred_check_branch
      %19 = sbr.rel (0) target = $region9
    $region8: #{tpu_custom_call.1} parent=1 // pred_region
      %20 = dma.done [#allocation3], 128
    $region9: #{tpu_custom_call.1} parent=1 // pred_fallthru
      _
    %v21 = vld [vmem:[#allocation2] sm:$0xff]
    %v22 = vmul.f32 %v21, %v21
    %v23 = vadd.f32 %v22, 1.0
    %v24 = vrsqrt.pop %v23
    %v25 = vmul.f32 %v23, %v24
    %vm26 = vcmp.eq.f32.partialorder %v23, inf
    %v27 = vsel %vm26, %v23, %v25
    %vm28 = vcmp.eq.f32.partialorder %v23, 0.0
    %v29 = vand.u32 %v23, 2147483648
    %v30 = vsel %vm28, %v29, %v27
    %v31 = vadd.f32 %v21, %v30
    %vm32 = vcmask 80896
    %v33 = vsel %vm32, %v31, 0.0
    %34 = vadd.xlane.f32.xlu0 %v33
    %v35 = vpop.xlane.xlu0 %34
    %v36 = vrcp.pop %v35
    %v37 = vmul.f32 %v31, %v36
    %38 = vst.msk [vmem:[#allocation5] sm:$0xff] %vm32, %v37
    // Predicated region
    $region10: #{tpu_custom_call.1} parent=1 // pred_check
      _
    $region11: #{tpu_custom_call.1} parent=1 // pred_check_branch
      %40 = sbr.rel (0) target = $region13
    $region12: #{tpu_custom_call.1} parent=1 // pred_region
      %s42 = ssub.s32 128, 128
      %43 = vsyncadd [#allocation4], %s42
      %s45 = sshll.u32 [#allocation5], 4
      %s46 = int_to_ptr.vmem [resolvable:$true] %s45
      %48 = dma.vmem_to_hbm [thread:$0]  %s46, 128, %s1, [#allocation4]
    $region13: #{tpu_custom_call.1} parent=1 // pred_fallthru
      _
    // Predicated region
    $region14: #{tpu_custom_call.1} parent=1 // pred_check
      _
    $region15: #{tpu_custom_call.1} parent=1 // pred_check_branch
      %50 = sbr.rel (0) target = $region17
    $region16: #{tpu_custom_call.1} parent=1 // pred_region
      %51 = dma.done [#allocation4], 128
    $region17: #{tpu_custom_call.1} parent=1 // pred_fallthru
      _
    %52 = vsyncpa [#allocation3], 1
    %53 = vsyncpa [#allocation4], 1

</llo_original>
